<compile_context>
chip_gen: v6e
topology: v6e:2x2x1
jax: 0.10.0
libtpu: 0.0.40
codegen_flags: <defaults>
</compile_context>

<pallas_src>
import functools

import jax
import jax.numpy as jnp
from jax.experimental import pallas as pl
from jax.experimental.pallas import tpu as pltpu


def _olstm_kernel(incat_ref, x2d_ref, p_ref, out_ref, *, T, B, nhid, offs):
    def dot_f32(a, b):
        return jnp.dot(a, b, preferred_element_type=jnp.float32)

    def get(name):
        r, nr, nc = offs[name]          # static Python ints -> static slice
        return p_ref[r:r + nr, :nc]

    # --- one-time fused MLP branches (block-diagonal weights keep the fc /
    # abs branches independent); output == concat(out_fc, out_abs) == h0 -----
    h1 = jnp.maximum(dot_f32(incat_ref[...], get("w1")) + get("b1"), 0.0)
    h2 = jnp.maximum(dot_f32(h1, get("w2")) + get("b2"), 0.0)
    h = dot_f32(h2, get("w3")) + get("b3")                    # (B, nhid), f32
    c = jnp.zeros_like(h)

    # --- hoisted non-recurrent input projection: one tall MXU matmul --------
    # (gate columns of wih/bias were pre-scaled by 0.5 in the wrapper)
    xw = dot_f32(x2d_ref[...], get("wih")) + get("blstm")     # (T*B, 4*nhid)

    # Recurrent weights cast once to bf16 -> single-pass MXU per step.
    whh = get("whh").astype(jnp.bfloat16)                     # (nhid, 4*nhid)

    # --- sequential LSTM recurrence, fully unrolled (T static & small) ------
    # PyTorch gate order: i, f, g, o.
    # NOTE: for T >~ 32 switch to lax.fori_loop over a VMEM xw scratch to
    # bound live ranges; at T=8 the unroll is optimal.
    for t in range(T):
        gates = xw[t * B:(t + 1) * B, :] + dot_f32(h.astype(jnp.bfloat16), whh)
        tg = jnp.tanh(gates)              # ONE full-width EUP pass
        sg = 0.5 * tg + 0.5               # sigmoid(x) = 0.5*tanh(x/2) + 0.5
        i_g = sg[:, 0 * nhid:1 * nhid]
        f_g = sg[:, 1 * nhid:2 * nhid]
        g_g = tg[:, 2 * nhid:3 * nhid]
        o_g = sg[:, 3 * nhid:4 * nhid]
        c = f_g * c + i_g * g_g
        h = o_g * jnp.tanh(c)

    # --- classifier on the final hidden state --------------------------------
    out_ref[...] = (dot_f32(h, get("wcls")) + get("bcls")).astype(out_ref.dtype)


def _block_diag(a, b):
    out = jnp.zeros((a.shape[0] + b.shape[0], a.shape[1] + b.shape[1]), a.dtype)
    out = out.at[: a.shape[0], : a.shape[1]].set(a)
    out = out.at[a.shape[0]:, a.shape[1]:].set(b)
    return out


def _pack_rows(blocks, width, row_align=8):
    """Stack named 2-D blocks into one (rows, width) f32 array.

    Each block is zero-padded to `width` columns and its row count padded to a
    multiple of `row_align` so every in-kernel slice starts sublane-aligned.
    Returns (packed_array, {name: (row_offset, nrows, ncols)}) with static ints.
    """
    chunks, offsets, row = [], {}, 0
    for name, a in blocks:
        a = jnp.asarray(a, jnp.float32)
        nr, nc = a.shape
        nr_pad = -(-nr // row_align) * row_align
        chunks.append(jnp.pad(a, ((0, nr_pad - nr), (0, width - nc))))
        offsets[name] = (row, nr, nc)
        row += nr_pad
    return jnp.concatenate(chunks, axis=0), offsets


def olstm_forward(input_fc, input_abs, x, raw):
    """raw: dict of PyTorch-layout parameters (see init_params)."""
    T, B, ninp = x.shape
    nhid = raw["whh"].shape[1]
    nout = raw["wcls"].shape[0]

    # ---- parameter packing (pure one-time layout work, done in XLA) ---------
    # Fused block-diagonal MLP: concat(out_fc, out_abs) == h0.
    w1f = _block_diag(raw["w1"].T, raw["w4"].T)
    b1f = jnp.concatenate([raw["b1"], raw["b4"]])[None, :]
    w2f = _block_diag(raw["w2"].T, raw["w5"].T)
    b2f = jnp.concatenate([raw["b2"], raw["b5"]])[None, :]
    w3f = _block_diag(raw["w3"].T, raw["w6"].T)       # (., 2*nout_fc) == (., nhid)
    b3f = jnp.concatenate([raw["b3"], raw["b6"]])[None, :]

    # LSTM params; pre-scale the i/f/o gate columns by 0.5 so that sigmoid(x)
    # can be recovered from a single tanh: sigmoid(x) = 0.5*tanh(x/2) + 0.5.
    # (0.5 is exact in bf16, so this adds no rounding error.)
    gate_scale = jnp.concatenate([
        jnp.full((nhid,), 0.5, jnp.float32),
        jnp.full((nhid,), 0.5, jnp.float32),
        jnp.ones((nhid,), jnp.float32),
        jnp.full((nhid,), 0.5, jnp.float32)])
    wih_t = raw["wih"].T * gate_scale[None, :]                 # (ninp, 4*nhid)
    whh_t = raw["whh"].T * gate_scale[None, :]                 # (nhid, 4*nhid)
    blstm = ((raw["b_ih"] + raw["b_hh"]) * gate_scale)[None, :]

    wcls_t = raw["wcls"].T                                     # (nhid, nout)
    bcls = raw["bcls"][None, :]

    blocks = [("wih", wih_t), ("whh", whh_t), ("blstm", blstm),
              ("w1", w1f), ("b1", b1f), ("w2", w2f), ("b2", b2f),
              ("w3", w3f), ("b3", b3f), ("wcls", wcls_t), ("bcls", bcls)]
    width = max(a.shape[1] for _, a in blocks)                 # 4*nhid here
    params, offs = _pack_rows(blocks, width)

    in_cat = jnp.concatenate([input_fc, input_abs], axis=1)    # (B, ninp_fc+ninp_abs)
    x2d = x.reshape(T * B, ninp)                               # time-major flatten

    kernel = functools.partial(_olstm_kernel, T=T, B=B, nhid=nhid, offs=offs)

    vmem = lambda: pl.BlockSpec(memory_space=pltpu.MemorySpace.VMEM)
    return pl.pallas_call(
        kernel,
        out_shape=jax.ShapeDtypeStruct((B, nout), jnp.float32),
        in_specs=[vmem(), vmem(), vmem()],
        out_specs=vmem(),
    )(in_cat, x2d, params)


def init_params(key, ninp_fc, nhid_fc, nout_fc, ninp_abs, nhid_abs, ninp, nhid, nout):
    """PyTorch-default init (+ kaiming-normal classifier weight), PyTorch layouts."""
    ks = iter(jax.random.split(key, 24))

    def lin(fan_in, fan_out):
        bound = 1.0 / jnp.sqrt(jnp.float32(fan_in))
        W = jax.random.uniform(next(ks), (fan_out, fan_in), jnp.float32, -bound, bound)
        b = jax.random.uniform(next(ks), (fan_out,), jnp.float32, -bound, bound)
        return W, b

    w1, b1 = lin(ninp_fc, nhid_fc)
    w2, b2 = lin(nhid_fc, nhid_fc)
    w3, b3 = lin(nhid_fc, nout_fc)
    w4, b4 = lin(ninp_abs, nhid_abs)
    w5, b5 = lin(nhid_abs, nhid_abs)
    w6, b6 = lin(nhid_abs, nout_fc)

    bound = 1.0 / jnp.sqrt(jnp.float32(nhid))
    wih = jax.random.uniform(next(ks), (4 * nhid, ninp), jnp.float32, -bound, bound)
    whh = jax.random.uniform(next(ks), (4 * nhid, nhid), jnp.float32, -bound, bound)
    b_ih = jax.random.uniform(next(ks), (4 * nhid,), jnp.float32, -bound, bound)
    b_hh = jax.random.uniform(next(ks), (4 * nhid,), jnp.float32, -bound, bound)

    # classifier: kaiming_normal_ weight, default-uniform bias
    std = jnp.sqrt(2.0 / jnp.float32(nhid))
    wcls = jax.random.normal(next(ks), (nout, nhid), jnp.float32) * std
    bcls = jax.random.uniform(next(ks), (nout,), jnp.float32, -bound, bound)

    return dict(w1=w1, b1=b1, w2=w2, b2=b2, w3=w3, b3=b3,
                w4=w4, b4=b4, w5=w5, b5=b5, w6=w6, b6=b6,
                wih=wih, whh=whh, b_ih=b_ih, b_hh=b_hh, wcls=wcls, bcls=bcls)


def ref_forward(input_fc, input_abs, x, raw):
    relu = lambda z: jnp.maximum(z, 0.0)
    h1 = relu(input_fc @ raw["w1"].T + raw["b1"])
    h2 = relu(h1 @ raw["w2"].T + raw["b2"])
    out_fc = h2 @ raw["w3"].T + raw["b3"]
    h1a = relu(input_abs @ raw["w4"].T + raw["b4"])
    h2a = relu(h1a @ raw["w5"].T + raw["b5"])
    out_abs = h2a @ raw["w6"].T + raw["b6"]
    h = jnp.concatenate([out_fc, out_abs], axis=1)
    c = jnp.zeros_like(h)
    nhid = h.shape[1]
    for t in range(x.shape[0]):
        gates = x[t] @ raw["wih"].T + raw["b_ih"] + h @ raw["whh"].T + raw["b_hh"]
        i = jax.nn.sigmoid(gates[:, 0 * nhid:1 * nhid])
        f = jax.nn.sigmoid(gates[:, 1 * nhid:2 * nhid])
        g = jnp.tanh(gates[:, 2 * nhid:3 * nhid])
        o = jax.nn.sigmoid(gates[:, 3 * nhid:4 * nhid])
        c = f * c + i * g
        h = o * jnp.tanh(c)
    return h @ raw["wcls"].T + raw["bcls"]


if __name__ == "__main__":
    # Module hyper-parameters (module forward is consistent only if
    # nhid == 2 * nout_fc and nlayers == 1).
    ninp_fc, nhid_fc, nout_fc = 16, 32, 16
    ninp_abs, nhid_abs = 16, 32
    ninp, nhid = 16, 32
    nout = 8
    B, T = 8, 8        # B multiple of 8 keeps per-step xw slices sublane-aligned
    assert nhid == 2 * nout_fc

    key = jax.random.PRNGKey(0)
    kp, k1, k2, k3 = jax.random.split(key, 4)
    raw = init_params(kp, ninp_fc, nhid_fc, nout_fc,
                      ninp_abs, nhid_abs, ninp, nhid, nout)

    input_fc = jax.random.normal(k1, (B, ninp_fc), jnp.float32)
    input_abs = jax.random.normal(k2, (B, ninp_abs), jnp.float32)
    x = jax.random.normal(k3, (T, B, ninp), jnp.float32)

    out = olstm_forward(input_fc, input_abs, x, raw)
    out = jax.block_until_ready(out)

    ref = ref_forward(input_fc, input_abs, x, raw)
    assert out.shape == (B, nout)
    # bf16 operands on the recurrent matmul -> tolerance loosened vs pure-f32.
    assert jnp.allclose(out, ref, atol=3e-2, rtol=3e-2), "Pallas output mismatch vs JAX reference"

    print("KERNEL_OK")
</pallas_src>

<mosaic_0001>
module attributes {stable_mosaic.version = 11 : i64} {
  func.func @_olstm_kernel(%arg0: memref<8x32xf32, #tpu.memory_space<vmem>>, %arg1: memref<64x16xf32, #tpu.memory_space<vmem>>, %arg2: memref<280x128xf32, #tpu.memory_space<vmem>>, %arg3: memref<8x8xf32, #tpu.memory_space<vmem>>) attributes {dimension_semantics = [], scalar_prefetch = 0 : i64, scratch_operands = 0 : i64, tpu.core_type = #tpu.core_type<tc>} {
    %c0 = arith.constant 0 : index
    %c0_0 = arith.constant 0 : index
    %0 = vector.load %arg0[%c0, %c0_0] : memref<8x32xf32, #tpu.memory_space<vmem>>, vector<8x32xf32>
    %c56 = arith.constant 56 : index
    %c0_1 = arith.constant 0 : index
    %1 = vector.load %arg2[%c56, %c0_1] : memref<280x128xf32, #tpu.memory_space<vmem>>, vector<32x64xf32>
    %cst = arith.constant dense<0.000000e+00> : vector<8x64xf32>
    %2 = tpu.matmul %0, %1, %cst {dimension_numbers = #tpu.dot_dimension_numbers<[1], [0], [0], [1], [0, 0, 1, 1], [], []>} : vector<8x32xf32>, vector<32x64xf32>, vector<8x64xf32> -> vector<8x64xf32>
    %c88 = arith.constant 88 : index
    %c0_2 = arith.constant 0 : index
    %3 = vector.load %arg2[%c88, %c0_2] : memref<280x128xf32, #tpu.memory_space<vmem>>, vector<1x64xf32>
    %4 = vector.broadcast %3 : vector<1x64xf32> to vector<8x64xf32>
    %5 = arith.addf %2, %4 : vector<8x64xf32>
    %cst_3 = arith.constant 0.000000e+00 : f32
    %6 = vector.broadcast %cst_3 : f32 to vector<8x64xf32>
    %7 = arith.maximumf %5, %6 : vector<8x64xf32>
    %c96 = arith.constant 96 : index
    %c0_4 = arith.constant 0 : index
    %8 = vector.load %arg2[%c96, %c0_4] : memref<280x128xf32, #tpu.memory_space<vmem>>, vector<64x64xf32>
    %cst_5 = arith.constant dense<0.000000e+00> : vector<8x64xf32>
    %9 = tpu.matmul %7, %8, %cst_5 {dimension_numbers = #tpu.dot_dimension_numbers<[1], [0], [0], [1], [0, 0, 1, 1], [], []>} : vector<8x64xf32>, vector<64x64xf32>, vector<8x64xf32> -> vector<8x64xf32>
    %c160 = arith.constant 160 : index
    %c0_6 = arith.constant 0 : index
    %10 = vector.load %arg2[%c160, %c0_6] : memref<280x128xf32, #tpu.memory_space<vmem>>, vector<1x64xf32>
    %11 = vector.broadcast %10 : vector<1x64xf32> to vector<8x64xf32>
    %12 = arith.addf %9, %11 : vector<8x64xf32>
    %cst_7 = arith.constant 0.000000e+00 : f32
    %13 = vector.broadcast %cst_7 : f32 to vector<8x64xf32>
    %14 = arith.maximumf %12, %13 : vector<8x64xf32>
    %c168 = arith.constant 168 : index
    %c0_8 = arith.constant 0 : index
    %15 = vector.load %arg2[%c168, %c0_8] : memref<280x128xf32, #tpu.memory_space<vmem>>, vector<64x32xf32>
    %cst_9 = arith.constant dense<0.000000e+00> : vector<8x32xf32>
    %16 = tpu.matmul %14, %15, %cst_9 {dimension_numbers = #tpu.dot_dimension_numbers<[1], [0], [0], [1], [0, 0, 1, 1], [], []>} : vector<8x64xf32>, vector<64x32xf32>, vector<8x32xf32> -> vector<8x32xf32>
    %c232 = arith.constant 232 : index
    %c0_10 = arith.constant 0 : index
    %17 = vector.load %arg2[%c232, %c0_10] : memref<280x128xf32, #tpu.memory_space<vmem>>, vector<1x32xf32>
    %18 = vector.broadcast %17 : vector<1x32xf32> to vector<8x32xf32>
    %19 = arith.addf %16, %18 : vector<8x32xf32>
    %cst_11 = arith.constant 0.000000e+00 : f32
    %20 = vector.broadcast %cst_11 : f32 to vector<8x32xf32>
    %c0_12 = arith.constant 0 : index
    %c0_13 = arith.constant 0 : index
    %21 = vector.load %arg1[%c0_12, %c0_13] : memref<64x16xf32, #tpu.memory_space<vmem>>, vector<64x16xf32>
    %c0_14 = arith.constant 0 : index
    %c0_15 = arith.constant 0 : index
    %22 = vector.load %arg2[%c0_14, %c0_15] : memref<280x128xf32, #tpu.memory_space<vmem>>, vector<16x128xf32>
    %cst_16 = arith.constant dense<0.000000e+00> : vector<64x128xf32>
    %23 = tpu.matmul %21, %22, %cst_16 {dimension_numbers = #tpu.dot_dimension_numbers<[1], [0], [0], [1], [0, 0, 1, 1], [], []>} : vector<64x16xf32>, vector<16x128xf32>, vector<64x128xf32> -> vector<64x128xf32>
    %c48 = arith.constant 48 : index
    %c0_17 = arith.constant 0 : index
    %24 = vector.load %arg2[%c48, %c0_17] : memref<280x128xf32, #tpu.memory_space<vmem>>, vector<1x128xf32>
    %25 = vector.broadcast %24 : vector<1x128xf32> to vector<64x128xf32>
    %26 = arith.addf %23, %25 : vector<64x128xf32>
    %c16 = arith.constant 16 : index
    %c0_18 = arith.constant 0 : index
    %27 = vector.load %arg2[%c16, %c0_18] : memref<280x128xf32, #tpu.memory_space<vmem>>, vector<32x128xf32>
    %28 = arith.truncf %27 : vector<32x128xf32> to vector<32x128xbf16>
    %29 = vector.extract_strided_slice %26 {offsets = [0, 0], sizes = [8, 128], strides = [1, 1]} : vector<64x128xf32> to vector<8x128xf32>
    %30 = arith.truncf %19 : vector<8x32xf32> to vector<8x32xbf16>
    %cst_19 = arith.constant dense<0.000000e+00> : vector<8x128xf32>
    %31 = tpu.matmul %30, %28, %cst_19 {dimension_numbers = #tpu.dot_dimension_numbers<[1], [0], [0], [1], [0, 0, 1, 1], [], []>} : vector<8x32xbf16>, vector<32x128xbf16>, vector<8x128xf32> -> vector<8x128xf32>
    %32 = arith.addf %29, %31 : vector<8x128xf32>
    %33 = math.tanh %32 : vector<8x128xf32>
    %cst_20 = arith.constant 5.000000e-01 : f32
    %34 = vector.broadcast %cst_20 : f32 to vector<8x128xf32>
    %35 = arith.mulf %34, %33 : vector<8x128xf32>
    %cst_21 = arith.constant 5.000000e-01 : f32
    %36 = vector.broadcast %cst_21 : f32 to vector<8x128xf32>
    %37 = arith.addf %35, %36 : vector<8x128xf32>
    %38 = vector.extract_strided_slice %37 {offsets = [0, 0], sizes = [8, 32], strides = [1, 1]} : vector<8x128xf32> to vector<8x32xf32>
    %39 = vector.extract_strided_slice %37 {offsets = [0, 32], sizes = [8, 32], strides = [1, 1]} : vector<8x128xf32> to vector<8x32xf32>
    %40 = vector.extract_strided_slice %33 {offsets = [0, 64], sizes = [8, 32], strides = [1, 1]} : vector<8x128xf32> to vector<8x32xf32>
    %41 = vector.extract_strided_slice %37 {offsets = [0, 96], sizes = [8, 32], strides = [1, 1]} : vector<8x128xf32> to vector<8x32xf32>
    %42 = arith.mulf %39, %20 : vector<8x32xf32>
    %43 = arith.mulf %38, %40 : vector<8x32xf32>
    %44 = arith.addf %42, %43 : vector<8x32xf32>
    %45 = math.tanh %44 : vector<8x32xf32>
    %46 = arith.mulf %41, %45 : vector<8x32xf32>
    %47 = vector.extract_strided_slice %26 {offsets = [8, 0], sizes = [8, 128], strides = [1, 1]} : vector<64x128xf32> to vector<8x128xf32>
    %48 = arith.truncf %46 : vector<8x32xf32> to vector<8x32xbf16>
    %cst_22 = arith.constant dense<0.000000e+00> : vector<8x128xf32>
    %49 = tpu.matmul %48, %28, %cst_22 {dimension_numbers = #tpu.dot_dimension_numbers<[1], [0], [0], [1], [0, 0, 1, 1], [], []>} : vector<8x32xbf16>, vector<32x128xbf16>, vector<8x128xf32> -> vector<8x128xf32>
    %50 = arith.addf %47, %49 : vector<8x128xf32>
    %51 = math.tanh %50 : vector<8x128xf32>
    %cst_23 = arith.constant 5.000000e-01 : f32
    %52 = vector.broadcast %cst_23 : f32 to vector<8x128xf32>
    %53 = arith.mulf %52, %51 : vector<8x128xf32>
    %cst_24 = arith.constant 5.000000e-01 : f32
    %54 = vector.broadcast %cst_24 : f32 to vector<8x128xf32>
    %55 = arith.addf %53, %54 : vector<8x128xf32>
    %56 = vector.extract_strided_slice %55 {offsets = [0, 0], sizes = [8, 32], strides = [1, 1]} : vector<8x128xf32> to vector<8x32xf32>
    %57 = vector.extract_strided_slice %55 {offsets = [0, 32], sizes = [8, 32], strides = [1, 1]} : vector<8x128xf32> to vector<8x32xf32>
    %58 = vector.extract_strided_slice %51 {offsets = [0, 64], sizes = [8, 32], strides = [1, 1]} : vector<8x128xf32> to vector<8x32xf32>
    %59 = vector.extract_strided_slice %55 {offsets = [0, 96], sizes = [8, 32], strides = [1, 1]} : vector<8x128xf32> to vector<8x32xf32>
    %60 = arith.mulf %57, %44 : vector<8x32xf32>
    %61 = arith.mulf %56, %58 : vector<8x32xf32>
    %62 = arith.addf %60, %61 : vector<8x32xf32>
    %63 = math.tanh %62 : vector<8x32xf32>
    %64 = arith.mulf %59, %63 : vector<8x32xf32>
    %65 = vector.extract_strided_slice %26 {offsets = [16, 0], sizes = [8, 128], strides = [1, 1]} : vector<64x128xf32> to vector<8x128xf32>
    %66 = arith.truncf %64 : vector<8x32xf32> to vector<8x32xbf16>
    %cst_25 = arith.constant dense<0.000000e+00> : vector<8x128xf32>
    %67 = tpu.matmul %66, %28, %cst_25 {dimension_numbers = #tpu.dot_dimension_numbers<[1], [0], [0], [1], [0, 0, 1, 1], [], []>} : vector<8x32xbf16>, vector<32x128xbf16>, vector<8x128xf32> -> vector<8x128xf32>
    %68 = arith.addf %65, %67 : vector<8x128xf32>
    %69 = math.tanh %68 : vector<8x128xf32>
    %cst_26 = arith.constant 5.000000e-01 : f32
    %70 = vector.broadcast %cst_26 : f32 to vector<8x128xf32>
    %71 = arith.mulf %70, %69 : vector<8x128xf32>
    %cst_27 = arith.constant 5.000000e-01 : f32
    %72 = vector.broadcast %cst_27 : f32 to vector<8x128xf32>
    %73 = arith.addf %71, %72 : vector<8x128xf32>
    %74 = vector.extract_strided_slice %73 {offsets = [0, 0], sizes = [8, 32], strides = [1, 1]} : vector<8x128xf32> to vector<8x32xf32>
    %75 = vector.extract_strided_slice %73 {offsets = [0, 32], sizes = [8, 32], strides = [1, 1]} : vector<8x128xf32> to vector<8x32xf32>
    %76 = vector.extract_strided_slice %69 {offsets = [0, 64], sizes = [8, 32], strides = [1, 1]} : vector<8x128xf32> to vector<8x32xf32>
    %77 = vector.extract_strided_slice %73 {offsets = [0, 96], sizes = [8, 32], strides = [1, 1]} : vector<8x128xf32> to vector<8x32xf32>
    %78 = arith.mulf %75, %62 : vector<8x32xf32>
    %79 = arith.mulf %74, %76 : vector<8x32xf32>
    %80 = arith.addf %78, %79 : vector<8x32xf32>
    %81 = math.tanh %80 : vector<8x32xf32>
    %82 = arith.mulf %77, %81 : vector<8x32xf32>
    %83 = vector.extract_strided_slice %26 {offsets = [24, 0], sizes = [8, 128], strides = [1, 1]} : vector<64x128xf32> to vector<8x128xf32>
    %84 = arith.truncf %82 : vector<8x32xf32> to vector<8x32xbf16>
    %cst_28 = arith.constant dense<0.000000e+00> : vector<8x128xf32>
    %85 = tpu.matmul %84, %28, %cst_28 {dimension_numbers = #tpu.dot_dimension_numbers<[1], [0], [0], [1], [0, 0, 1, 1], [], []>} : vector<8x32xbf16>, vector<32x128xbf16>, vector<8x128xf32> -> vector<8x128xf32>
    %86 = arith.addf %83, %85 : vector<8x128xf32>
    %87 = math.tanh %86 : vector<8x128xf32>
    %cst_29 = arith.constant 5.000000e-01 : f32
    %88 = vector.broadcast %cst_29 : f32 to vector<8x128xf32>
    %89 = arith.mulf %88, %87 : vector<8x128xf32>
    %cst_30 = arith.constant 5.000000e-01 : f32
    %90 = vector.broadcast %cst_30 : f32 to vector<8x128xf32>
    %91 = arith.addf %89, %90 : vector<8x128xf32>
    %92 = vector.extract_strided_slice %91 {offsets = [0, 0], sizes = [8, 32], strides = [1, 1]} : vector<8x128xf32> to vector<8x32xf32>
    %93 = vector.extract_strided_slice %91 {offsets = [0, 32], sizes = [8, 32], strides = [1, 1]} : vector<8x128xf32> to vector<8x32xf32>
    %94 = vector.extract_strided_slice %87 {offsets = [0, 64], sizes = [8, 32], strides = [1, 1]} : vector<8x128xf32> to vector<8x32xf32>
    %95 = vector.extract_strided_slice %91 {offsets = [0, 96], sizes = [8, 32], strides = [1, 1]} : vector<8x128xf32> to vector<8x32xf32>
    %96 = arith.mulf %93, %80 : vector<8x32xf32>
    %97 = arith.mulf %92, %94 : vector<8x32xf32>
    %98 = arith.addf %96, %97 : vector<8x32xf32>
    %99 = math.tanh %98 : vector<8x32xf32>
    %100 = arith.mulf %95, %99 : vector<8x32xf32>
    %101 = vector.extract_strided_slice %26 {offsets = [32, 0], sizes = [8, 128], strides = [1, 1]} : vector<64x128xf32> to vector<8x128xf32>
    %102 = arith.truncf %100 : vector<8x32xf32> to vector<8x32xbf16>
    %cst_31 = arith.constant dense<0.000000e+00> : vector<8x128xf32>
    %103 = tpu.matmul %102, %28, %cst_31 {dimension_numbers = #tpu.dot_dimension_numbers<[1], [0], [0], [1], [0, 0, 1, 1], [], []>} : vector<8x32xbf16>, vector<32x128xbf16>, vector<8x128xf32> -> vector<8x128xf32>
    %104 = arith.addf %101, %103 : vector<8x128xf32>
    %105 = math.tanh %104 : vector<8x128xf32>
    %cst_32 = arith.constant 5.000000e-01 : f32
    %106 = vector.broadcast %cst_32 : f32 to vector<8x128xf32>
    %107 = arith.mulf %106, %105 : vector<8x128xf32>
    %cst_33 = arith.constant 5.000000e-01 : f32
    %108 = vector.broadcast %cst_33 : f32 to vector<8x128xf32>
    %109 = arith.addf %107, %108 : vector<8x128xf32>
    %110 = vector.extract_strided_slice %109 {offsets = [0, 0], sizes = [8, 32], strides = [1, 1]} : vector<8x128xf32> to vector<8x32xf32>
    %111 = vector.extract_strided_slice %109 {offsets = [0, 32], sizes = [8, 32], strides = [1, 1]} : vector<8x128xf32> to vector<8x32xf32>
    %112 = vector.extract_strided_slice %105 {offsets = [0, 64], sizes = [8, 32], strides = [1, 1]} : vector<8x128xf32> to vector<8x32xf32>
    %113 = vector.extract_strided_slice %109 {offsets = [0, 96], sizes = [8, 32], strides = [1, 1]} : vector<8x128xf32> to vector<8x32xf32>
    %114 = arith.mulf %111, %98 : vector<8x32xf32>
    %115 = arith.mulf %110, %112 : vector<8x32xf32>
    %116 = arith.addf %114, %115 : vector<8x32xf32>
    %117 = math.tanh %116 : vector<8x32xf32>
    %118 = arith.mulf %113, %117 : vector<8x32xf32>
    %119 = vector.extract_strided_slice %26 {offsets = [40, 0], sizes = [8, 128], strides = [1, 1]} : vector<64x128xf32> to vector<8x128xf32>
    %120 = arith.truncf %118 : vector<8x32xf32> to vector<8x32xbf16>
    %cst_34 = arith.constant dense<0.000000e+00> : vector<8x128xf32>
    %121 = tpu.matmul %120, %28, %cst_34 {dimension_numbers = #tpu.dot_dimension_numbers<[1], [0], [0], [1], [0, 0, 1, 1], [], []>} : vector<8x32xbf16>, vector<32x128xbf16>, vector<8x128xf32> -> vector<8x128xf32>
    %122 = arith.addf %119, %121 : vector<8x128xf32>
    %123 = math.tanh %122 : vector<8x128xf32>
    %cst_35 = arith.constant 5.000000e-01 : f32
    %124 = vector.broadcast %cst_35 : f32 to vector<8x128xf32>
    %125 = arith.mulf %124, %123 : vector<8x128xf32>
    %cst_36 = arith.constant 5.000000e-01 : f32
    %126 = vector.broadcast %cst_36 : f32 to vector<8x128xf32>
    %127 = arith.addf %125, %126 : vector<8x128xf32>
    %128 = vector.extract_strided_slice %127 {offsets = [0, 0], sizes = [8, 32], strides = [1, 1]} : vector<8x128xf32> to vector<8x32xf32>
    %129 = vector.extract_strided_slice %127 {offsets = [0, 32], sizes = [8, 32], strides = [1, 1]} : vector<8x128xf32> to vector<8x32xf32>
    %130 = vector.extract_strided_slice %123 {offsets = [0, 64], sizes = [8, 32], strides = [1, 1]} : vector<8x128xf32> to vector<8x32xf32>
    %131 = vector.extract_strided_slice %127 {offsets = [0, 96], sizes = [8, 32], strides = [1, 1]} : vector<8x128xf32> to vector<8x32xf32>
    %132 = arith.mulf %129, %116 : vector<8x32xf32>
    %133 = arith.mulf %128, %130 : vector<8x32xf32>
    %134 = arith.addf %132, %133 : vector<8x32xf32>
    %135 = math.tanh %134 : vector<8x32xf32>
    %136 = arith.mulf %131, %135 : vector<8x32xf32>
    %137 = vector.extract_strided_slice %26 {offsets = [48, 0], sizes = [8, 128], strides = [1, 1]} : vector<64x128xf32> to vector<8x128xf32>
    %138 = arith.truncf %136 : vector<8x32xf32> to vector<8x32xbf16>
    %cst_37 = arith.constant dense<0.000000e+00> : vector<8x128xf32>
    %139 = tpu.matmul %138, %28, %cst_37 {dimension_numbers = #tpu.dot_dimension_numbers<[1], [0], [0], [1], [0, 0, 1, 1], [], []>} : vector<8x32xbf16>, vector<32x128xbf16>, vector<8x128xf32> -> vector<8x128xf32>
    %140 = arith.addf %137, %139 : vector<8x128xf32>
    %141 = math.tanh %140 : vector<8x128xf32>
    %cst_38 = arith.constant 5.000000e-01 : f32
    %142 = vector.broadcast %cst_38 : f32 to vector<8x128xf32>
    %143 = arith.mulf %142, %141 : vector<8x128xf32>
    %cst_39 = arith.constant 5.000000e-01 : f32
    %144 = vector.broadcast %cst_39 : f32 to vector<8x128xf32>
    %145 = arith.addf %143, %144 : vector<8x128xf32>
    %146 = vector.extract_strided_slice %145 {offsets = [0, 0], sizes = [8, 32], strides = [1, 1]} : vector<8x128xf32> to vector<8x32xf32>
    %147 = vector.extract_strided_slice %145 {offsets = [0, 32], sizes = [8, 32], strides = [1, 1]} : vector<8x128xf32> to vector<8x32xf32>
    %148 = vector.extract_strided_slice %141 {offsets = [0, 64], sizes = [8, 32], strides = [1, 1]} : vector<8x128xf32> to vector<8x32xf32>
    %149 = vector.extract_strided_slice %145 {offsets = [0, 96], sizes = [8, 32], strides = [1, 1]} : vector<8x128xf32> to vector<8x32xf32>
    %150 = arith.mulf %147, %134 : vector<8x32xf32>
    %151 = arith.mulf %146, %148 : vector<8x32xf32>
    %152 = arith.addf %150, %151 : vector<8x32xf32>
    %153 = math.tanh %152 : vector<8x32xf32>
    %154 = arith.mulf %149, %153 : vector<8x32xf32>
    %155 = vector.extract_strided_slice %26 {offsets = [56, 0], sizes = [8, 128], strides = [1, 1]} : vector<64x128xf32> to vector<8x128xf32>
    %156 = arith.truncf %154 : vector<8x32xf32> to vector<8x32xbf16>
    %cst_40 = arith.constant dense<0.000000e+00> : vector<8x128xf32>
    %157 = tpu.matmul %156, %28, %cst_40 {dimension_numbers = #tpu.dot_dimension_numbers<[1], [0], [0], [1], [0, 0, 1, 1], [], []>} : vector<8x32xbf16>, vector<32x128xbf16>, vector<8x128xf32> -> vector<8x128xf32>
    %158 = arith.addf %155, %157 : vector<8x128xf32>
    %159 = math.tanh %158 : vector<8x128xf32>
    %cst_41 = arith.constant 5.000000e-01 : f32
    %160 = vector.broadcast %cst_41 : f32 to vector<8x128xf32>
    %161 = arith.mulf %160, %159 : vector<8x128xf32>
    %cst_42 = arith.constant 5.000000e-01 : f32
    %162 = vector.broadcast %cst_42 : f32 to vector<8x128xf32>
    %163 = arith.addf %161, %162 : vector<8x128xf32>
    %164 = vector.extract_strided_slice %163 {offsets = [0, 0], sizes = [8, 32], strides = [1, 1]} : vector<8x128xf32> to vector<8x32xf32>
    %165 = vector.extract_strided_slice %163 {offsets = [0, 32], sizes = [8, 32], strides = [1, 1]} : vector<8x128xf32> to vector<8x32xf32>
    %166 = vector.extract_strided_slice %159 {offsets = [0, 64], sizes = [8, 32], strides = [1, 1]} : vector<8x128xf32> to vector<8x32xf32>
    %167 = vector.extract_strided_slice %163 {offsets = [0, 96], sizes = [8, 32], strides = [1, 1]} : vector<8x128xf32> to vector<8x32xf32>
    %168 = arith.mulf %165, %152 : vector<8x32xf32>
    %169 = arith.mulf %164, %166 : vector<8x32xf32>
    %170 = arith.addf %168, %169 : vector<8x32xf32>
    %171 = math.tanh %170 : vector<8x32xf32>
    %172 = arith.mulf %167, %171 : vector<8x32xf32>
    %c240 = arith.constant 240 : index
    %c0_43 = arith.constant 0 : index
    %173 = vector.load %arg2[%c240, %c0_43] : memref<280x128xf32, #tpu.memory_space<vmem>>, vector<32x8xf32>
    %cst_44 = arith.constant dense<0.000000e+00> : vector<8x8xf32>
    %174 = tpu.matmul %172, %173, %cst_44 {dimension_numbers = #tpu.dot_dimension_numbers<[1], [0], [0], [1], [0, 0, 1, 1], [], []>} : vector<8x32xf32>, vector<32x8xf32>, vector<8x8xf32> -> vector<8x8xf32>
    %c272 = arith.constant 272 : index
    %c0_45 = arith.constant 0 : index
    %175 = vector.load %arg2[%c272, %c0_45] : memref<280x128xf32, #tpu.memory_space<vmem>>, vector<1x8xf32>
    %176 = vector.broadcast %175 : vector<1x8xf32> to vector<8x8xf32>
    %177 = arith.addf %174, %176 : vector<8x8xf32>
    %c0_46 = arith.constant 0 : index
    %c0_47 = arith.constant 0 : index
    %178 = vector.load %arg3[%c0_46, %c0_47] : memref<8x8xf32, #tpu.memory_space<vmem>>, vector<8x8xf32>
    tpu.vector_store %arg3[%c0_46, %c0_47], %177 {strides = array<i32>} : memref<8x8xf32, #tpu.memory_space<vmem>>, vector<8x8xf32>,
    return
  }
}

</mosaic_0001>

<llo_original>
// kernel: tpu_custom_call.1
$region0: #{tpu_custom_call.1}
  #allocation0 [shape = 'u32[]', space=smem, size = 0x4, offset = 0x4, fixed_abs, tag = 'smem constant byte address 0x4 - core index']
  #allocation1 [shape = 'u32[144,128]{1,0:T(1,128)}', space=vmem, size = 0x12000, scoped, tag = 'internal scratch']
  %s0 = inlined_call_operand.vmem [shape: f32[8,32], index: 0, kind: input, shape index: {}]
  %s1 = inlined_call_operand.vmem [shape: f32[64,16], index: 1, kind: input, shape index: {}]
  %s2 = inlined_call_operand.hbm [shape: f32[280,128], index: 2, kind: input, shape index: {}]
  %s3 = inlined_call_operand.hbm [shape: f32[8,8], index: 3, kind: output, shape index: {}]
  %s4 = sld [smem:[#allocation0]]
  $region26: #{tpu_custom_call.1} parent=0
    _
  %s6 = ssub.s32 1, %s4
  %s7 = scalar_select 0, %s6, %s4
  $region1: #{tpu_custom_call.1} parent=0
    #allocation2 [shape = 'u8[143360]{0}', space=vmem, size = 0x23000, scoped, tag = 'input window, operand 2, single buffered']
    #allocation3 [shape = 's32[1]{0}', space=sflag, size = 0x4, scoped, tag = 'scoped memory for tpu_custom_call.1']
    #allocation4 [shape = 's32[1]{0}', space=sflag, size = 0x4, scoped, tag = 'scoped memory for tpu_custom_call.1']
    #allocation5 [shape = 'u8[4096]{0}', space=vmem, size = 0x1000, scoped, tag = 'output window, operand 0, single buffered']
    %8 = vsyncpa [#allocation3], 0
    %9 = vsyncpa [#allocation4], 0
    // Predicated region
    $region2: #{tpu_custom_call.1} parent=1 // pred_check
      _
    $region3: #{tpu_custom_call.1} parent=1 // pred_check_branch
      %11 = sbr.rel (0) target = $region5
    $region4: #{tpu_custom_call.1} parent=1 // pred_region
      _
    $region5: #{tpu_custom_call.1} parent=1 // pred_fallthru
      _
    // Predicated region
    $region6: #{tpu_custom_call.1} parent=1 // pred_check
      _
    $region7: #{tpu_custom_call.1} parent=1 // pred_check_branch
      %13 = sbr.rel (0) target = $region9
    $region8: #{tpu_custom_call.1} parent=1 // pred_region
      _
    $region9: #{tpu_custom_call.1} parent=1 // pred_fallthru
      _
    // Predicated region
    $region10: #{tpu_custom_call.1} parent=1 // pred_check
      _
    $region11: #{tpu_custom_call.1} parent=1 // pred_check_branch
      %15 = sbr.rel (0) target = $region13
    $region12: #{tpu_custom_call.1} parent=1 // pred_region
      %s17 = ssub.s32 4480, 4480
      %18 = vsyncadd [#allocation3], %s17
      %s19 = sshll.u32 [#allocation2], 4
      %s20 = int_to_ptr.vmem [resolvable:$true] %s19
      %25 = dma.hbm_to_vmem [thread:$0]  %s2, 4480, %s20, [#allocation3], 128, 128, 8
    $region13: #{tpu_custom_call.1} parent=1 // pred_fallthru
      _
    // Predicated region
    $region14: #{tpu_custom_call.1} parent=1 // pred_check
      _
    $region15: #{tpu_custom_call.1} parent=1 // pred_check_branch
      %27 = sbr.rel (0) target = $region17
    $region16: #{tpu_custom_call.1} parent=1 // pred_region
      %28 = dma.done [#allocation3], 4480
    $region17: #{tpu_custom_call.1} parent=1 // pred_fallthru
      _
    %v30 = vld [vmem:[%s0] sm:$0xff]
    %v31 = vld [vmem:[#allocation2 + $0x38] sm:$0xff]
    %v32 = vld [vmem:[#allocation2 + $0x40] sm:$0xff]
    %v33 = vld [vmem:[#allocation2 + $0x48] sm:$0xff]
    %v34 = vld [vmem:[#allocation2 + $0x50] sm:$0xff]
    %v35 = vld [vmem:[#allocation2 + $0x58] sm:$0x1]
    %v36 = vlaneseq
    %v37 = vshrl.u32 %v36, 7
    %v38 = vsub.s32 0, %v37
    %v39 = vrot.slane %v35, %v38
    %vm40 = vcmask 261120
    %v42 = vsel %vm40, %v30, 0
    %44 = vmatprep.subr.mxu0 0.0
    %45 = vmatpush1.msra.mxu0 0.0
    %46 = vmatprep.subr.mxu0 0.0
    %47 = vmatpush1.msra.mxu0 0.0
    %48 = vmatprep.subr.mxu0 0.0
    %49 = vmatpush1.msra.mxu0 0.0
    %50 = vmatprep.subr.mxu0 0.0
    %51 = vmatpush1.msra.mxu0 0.0
    %52 = vmatprep.subr.mxu0 0.0
    %53 = vmatpush1.msra.mxu0 0.0
    %54 = vmatprep.subr.mxu0 0.0
    %55 = vmatpush1.msra.mxu0 0.0
    %56 = vmatprep.subr.mxu0 0.0
    %57 = vmatpush1.msra.mxu0 0.0
    %58 = vmatprep.subr.mxu0 0.0
    %59 = vmatpush1.msra.mxu0 0.0
    %60 = vmatprep.subr.mxu0 0.0
    %61 = vmatpush1.msra.mxu0 0.0
    %62 = vmatprep.subr.mxu0 0.0
    %63 = vmatpush1.msra.mxu0 0.0
    %64 = vmatprep.subr.mxu0 0.0
    %65 = vmatpush1.msra.mxu0 0.0
    %66 = vmatprep.subr.mxu0 0.0
    %67 = vmatpush1.msra.mxu0 0.0
    %68 = vmatprep.subr.mxu0 0.0
    %69 = vmatpush1.msra.mxu0 %v34
    %70 = vmatprep.subr.mxu0 0.0
    %71 = vmatpush1.msra.mxu0 %v33
    %72 = vmatprep.subr.mxu0 0.0
    %73 = vmatpush1.msra.mxu0 %v32
    %74 = vmatprep.subr.mxu0 0.0
    %75 = vmatpush1.msra.mxu0 %v31
    %76 = vmatprep.subr.mxu0 0.0
    %77 = vmatpush2.msra.mxu0 0.0
    %78 = vmatprep.subr.mxu0 0.0
    %79 = vmatpush2.msra.mxu0 0.0
    %80 = vmatprep.subr.mxu0 0.0
    %81 = vmatpush2.msra.mxu0 0.0
    %82 = vmatprep.subr.mxu0 0.0
    %83 = vmatpush2.msra.mxu0 0.0
    %84 = vmatprep.subr.mxu0 0.0
    %85 = vmatpush2.msra.mxu0 0.0
    %86 = vmatprep.subr.mxu0 0.0
    %87 = vmatpush2.msra.mxu0 0.0
    %88 = vmatprep.subr.mxu0 0.0
    %89 = vmatpush2.msra.mxu0 0.0
    %90 = vmatprep.subr.mxu0 0.0
    %91 = vmatpush2.msra.mxu0 0.0
    %92 = vmatprep.subr.mxu0 0.0
    %93 = vmatpush2.msra.mxu0 0.0
    %94 = vmatprep.subr.mxu0 0.0
    %95 = vmatpush2.msra.mxu0 0.0
    %96 = vmatprep.subr.mxu0 0.0
    %97 = vmatpush2.msra.mxu0 0.0
    %98 = vmatprep.subr.mxu0 0.0
    %99 = vmatpush2.msra.mxu0 0.0
    %100 = vmatprep.subr.mxu0 0.0
    %101 = vmatpush2.msra.mxu0 0.0
    %102 = vmatprep.subr.mxu0 0.0
    %103 = vmatpush2.msra.mxu0 0.0
    %104 = vmatprep.subr.mxu0 0.0
    %105 = vmatpush2.msra.mxu0 0.0
    %106 = vmatprep.subr.mxu0 0.0
    %107 = vmatpush2.msra.mxu0 0.0
    %108 = vmatprep.mubr.f32.mxu0 0.0
    %109 = vmatmul.mubr.f32.gmra.mxu0 %v42
    %v110 = vpop.f32.mrf.mxu0
    %v111 = vadd.f32 %v39, %v110
    %v112 = vpop.f32.mrf.mxu0
    %113 = vdwg.mxu0
    %v114 = vmax.f32 %v111, 0.0
    %v115 = vld [vmem:[#allocation2 + $0x60] sm:$0xff]
    %v116 = vld [vmem:[#allocation2 + $0x68] sm:$0xff]
    %v117 = vld [vmem:[#allocation2 + $0x70] sm:$0xff]
    %v118 = vld [vmem:[#allocation2 + $0x78] sm:$0xff]
    %v119 = vld [vmem:[#allocation2 + $0x80] sm:$0xff]
    %v120 = vld [vmem:[#allocation2 + $0x88] sm:$0xff]
    %v121 = vld [vmem:[#allocation2 + $0x90] sm:$0xff]
    %v122 = vld [vmem:[#allocation2 + $0x98] sm:$0xff]
    %v123 = vld [vmem:[#allocation2 + $0xa0] sm:$0x1]
    %v124 = vlaneseq
    %v125 = vshrl.u32 %v124, 7
    %v126 = vsub.s32 0, %v125
    %v127 = vrot.slane %v123, %v126
    %vm128 = vcmask 523264
    %v130 = vsel %vm128, %v114, 0
    %132 = vmatprep.subr.mxu0 0.0
    %133 = vmatpush1.msra.mxu0 0.0
    %134 = vmatprep.subr.mxu0 0.0
    %135 = vmatpush1.msra.mxu0 0.0
    %136 = vmatprep.subr.mxu0 0.0
    %137 = vmatpush1.msra.mxu0 0.0
    %138 = vmatprep.subr.mxu0 0.0
    %139 = vmatpush1.msra.mxu0 0.0
    %140 = vmatprep.subr.mxu0 0.0
    %141 = vmatpush1.msra.mxu0 0.0
    %142 = vmatprep.subr.mxu0 0.0
    %143 = vmatpush1.msra.mxu0 0.0
    %144 = vmatprep.subr.mxu0 0.0
    %145 = vmatpush1.msra.mxu0 0.0
    %146 = vmatprep.subr.mxu0 0.0
    %147 = vmatpush1.msra.mxu0 0.0
    %148 = vmatprep.subr.mxu0 0.0
    %149 = vmatpush1.msra.mxu0 %v122
    %150 = vmatprep.subr.mxu0 0.0
    %151 = vmatpush1.msra.mxu0 %v121
    %152 = vmatprep.subr.mxu0 0.0
    %153 = vmatpush1.msra.mxu0 %v120
    %154 = vmatprep.subr.mxu0 0.0
    %155 = vmatpush1.msra.mxu0 %v119
    %156 = vmatprep.subr.mxu0 0.0
    %157 = vmatpush1.msra.mxu0 %v118
    %158 = vmatprep.subr.mxu0 0.0
    %159 = vmatpush1.msra.mxu0 %v117
    %160 = vmatprep.subr.mxu0 0.0
    %161 = vmatpush1.msra.mxu0 %v116
    %162 = vmatprep.subr.mxu0 0.0
    %163 = vmatpush1.msra.mxu0 %v115
    %164 = vmatprep.subr.mxu0 0.0
    %165 = vmatpush2.msra.mxu0 0.0
    %166 = vmatprep.subr.mxu0 0.0
    %167 = vmatpush2.msra.mxu0 0.0
    %168 = vmatprep.subr.mxu0 0.0
    %169 = vmatpush2.msra.mxu0 0.0
    %170 = vmatprep.subr.mxu0 0.0
    %171 = vmatpush2.msra.mxu0 0.0
    %172 = vmatprep.subr.mxu0 0.0
    %173 = vmatpush2.msra.mxu0 0.0
    %174 = vmatprep.subr.mxu0 0.0
    %175 = vmatpush2.msra.mxu0 0.0
    %176 = vmatprep.subr.mxu0 0.0
    %177 = vmatpush2.msra.mxu0 0.0
    %178 = vmatprep.subr.mxu0 0.0
    %179 = vmatpush2.msra.mxu0 0.0
    %180 = vmatprep.subr.mxu0 0.0
    %181 = vmatpush2.msra.mxu0 0.0
    %182 = vmatprep.subr.mxu0 0.0
    %183 = vmatpush2.msra.mxu0 0.0
    %184 = vmatprep.subr.mxu0 0.0
    %185 = vmatpush2.msra.mxu0 0.0
    %186 = vmatprep.subr.mxu0 0.0
    %187 = vmatpush2.msra.mxu0 0.0
    %188 = vmatprep.subr.mxu0 0.0
    %189 = vmatpush2.msra.mxu0 0.0
    %190 = vmatprep.subr.mxu0 0.0
    %191 = vmatpush2.msra.mxu0 0.0
    %192 = vmatprep.subr.mxu0 0.0
    %193 = vmatpush2.msra.mxu0 0.0
    %194 = vmatprep.subr.mxu0 0.0
    %195 = vmatpush2.msra.mxu0 0.0
    %196 = vmatprep.mubr.f32.mxu0 0.0
    %197 = vmatmul.mubr.f32.gmra.mxu0 %v130
    %v198 = vpop.f32.mrf.mxu0
    %v199 = vadd.f32 %v127, %v198
    %v200 = vpop.f32.mrf.mxu0
    %201 = vdwg.mxu0
    %v202 = vmax.f32 %v199, 0.0
    %v203 = vld [vmem:[#allocation2 + $0xa8] sm:$0xff]
    %v204 = vld [vmem:[#allocation2 + $0xb0] sm:$0xff]
    %v205 = vld [vmem:[#allocation2 + $0xb8] sm:$0xff]
    %v206 = vld [vmem:[#allocation2 + $0xc0] sm:$0xff]
    %v207 = vld [vmem:[#allocation2 + $0xc8] sm:$0xff]
    %v208 = vld [vmem:[#allocation2 + $0xd0] sm:$0xff]
    %v209 = vld [vmem:[#allocation2 + $0xd8] sm:$0xff]
    %v210 = vld [vmem:[#allocation2 + $0xe0] sm:$0xff]
    %v211 = vld [vmem:[#allocation2 + $0xe8] sm:$0x1]
    %v212 = vlaneseq
    %v213 = vshrl.u32 %v212, 7
    %v214 = vsub.s32 0, %v213
    %v215 = vrot.slane %v211, %v214
    %v217 = vsel %vm128, %v202, 0
    %219 = vmatprep.subr.mxu0 0.0
    %220 = vmatpush1.msra.mxu0 0.0
    %221 = vmatprep.subr.mxu0 0.0
    %222 = vmatpush1.msra.mxu0 0.0
    %223 = vmatprep.subr.mxu0 0.0
    %224 = vmatpush1.msra.mxu0 0.0
    %225 = vmatprep.subr.mxu0 0.0
    %226 = vmatpush1.msra.mxu0 0.0
    %227 = vmatprep.subr.mxu0 0.0
    %228 = vmatpush1.msra.mxu0 0.0
    %229 = vmatprep.subr.mxu0 0.0
    %230 = vmatpush1.msra.mxu0 0.0
    %231 = vmatprep.subr.mxu0 0.0
    %232 = vmatpush1.msra.mxu0 0.0
    %233 = vmatprep.subr.mxu0 0.0
    %234 = vmatpush1.msra.mxu0 0.0
    %235 = vmatprep.subr.mxu0 0.0
    %236 = vmatpush1.msra.mxu0 %v210
    %237 = vmatprep.subr.mxu0 0.0
    %238 = vmatpush1.msra.mxu0 %v209
    %239 = vmatprep.subr.mxu0 0.0
    %240 = vmatpush1.msra.mxu0 %v208
    %241 = vmatprep.subr.mxu0 0.0
    %242 = vmatpush1.msra.mxu0 %v207
    %243 = vmatprep.subr.mxu0 0.0
    %244 = vmatpush1.msra.mxu0 %v206
    %245 = vmatprep.subr.mxu0 0.0
    %246 = vmatpush1.msra.mxu0 %v205
    %247 = vmatprep.subr.mxu0 0.0
    %248 = vmatpush1.msra.mxu0 %v204
    %249 = vmatprep.subr.mxu0 0.0
    %250 = vmatpush1.msra.mxu0 %v203
    %251 = vmatprep.subr.mxu0 0.0
    %252 = vmatpush2.msra.mxu0 0.0
    %253 = vmatprep.subr.mxu0 0.0
    %254 = vmatpush2.msra.mxu0 0.0
    %255 = vmatprep.subr.mxu0 0.0
    %256 = vmatpush2.msra.mxu0 0.0
    %257 = vmatprep.subr.mxu0 0.0
    %258 = vmatpush2.msra.mxu0 0.0
    %259 = vmatprep.subr.mxu0 0.0
    %260 = vmatpush2.msra.mxu0 0.0
    %261 = vmatprep.subr.mxu0 0.0
    %262 = vmatpush2.msra.mxu0 0.0
    %263 = vmatprep.subr.mxu0 0.0
    %264 = vmatpush2.msra.mxu0 0.0
    %265 = vmatprep.subr.mxu0 0.0
    %266 = vmatpush2.msra.mxu0 0.0
    %267 = vmatprep.subr.mxu0 0.0
    %268 = vmatpush2.msra.mxu0 0.0
    %269 = vmatprep.subr.mxu0 0.0
    %270 = vmatpush2.msra.mxu0 0.0
    %271 = vmatprep.subr.mxu0 0.0
    %272 = vmatpush2.msra.mxu0 0.0
    %273 = vmatprep.subr.mxu0 0.0
    %274 = vmatpush2.msra.mxu0 0.0
    %275 = vmatprep.subr.mxu0 0.0
    %276 = vmatpush2.msra.mxu0 0.0
    %277 = vmatprep.subr.mxu0 0.0
    %278 = vmatpush2.msra.mxu0 0.0
    %279 = vmatprep.subr.mxu0 0.0
    %280 = vmatpush2.msra.mxu0 0.0
    %281 = vmatprep.subr.mxu0 0.0
    %282 = vmatpush2.msra.mxu0 0.0
    %283 = vmatprep.mubr.f32.mxu0 0.0
    %284 = vmatmul.mubr.f32.gmra.mxu0 %v217
    %v285 = vpop.f32.mrf.mxu0
    %v286 = vadd.f32 %v215, %v285
    %v287 = vpop.f32.mrf.mxu0
    %288 = vdwg.mxu0
    %v289 = vld [vmem:[%s1] sm:$0xff]
    %v290 = vld [vmem:[%s1 + $0x8] sm:$0xff]
    %v291 = vld [vmem:[%s1 + $0x10] sm:$0xff]
    %v292 = vld [vmem:[%s1 + $0x18] sm:$0xff]
    %v293 = vld [vmem:[%s1 + $0x20] sm:$0xff]
    %v294 = vld [vmem:[%s1 + $0x28] sm:$0xff]
    %v295 = vld [vmem:[%s1 + $0x30] sm:$0xff]
    %v296 = vld [vmem:[%s1 + $0x38] sm:$0xff]
    %v297 = vld [vmem:[#allocation2] sm:$0xff]
    %v298 = vld [vmem:[#allocation2 + $0x8] sm:$0xff]
    %v299 = vld [vmem:[#allocation2 + $0x30] sm:$0x1]
    %v300 = vlaneseq
    %v301 = vshrl.u32 %v300, 7
    %v302 = vsub.s32 0, %v301
    %v303 = vrot.slane %v299, %v302
    %vm304 = vcmask 130048
    %v306 = vsel %vm304, %v289, 0
    %v309 = vsel %vm304, %v290, 0
    %v312 = vsel %vm304, %v291, 0
    %v315 = vsel %vm304, %v292, 0
    %v318 = vsel %vm304, %v293, 0
    %v321 = vsel %vm304, %v294, 0
    %v324 = vsel %vm304, %v295, 0
    %v327 = vsel %vm304, %v296, 0
    %329 = vmatprep.subr.mxu0 0.0
    %330 = vmatpush1.msra.mxu0 0.0
    %331 = vmatprep.subr.mxu0 0.0
    %332 = vmatpush1.msra.mxu0 0.0
    %333 = vmatprep.subr.mxu0 0.0
    %334 = vmatpush1.msra.mxu0 0.0
    %335 = vmatprep.subr.mxu0 0.0
    %336 = vmatpush1.msra.mxu0 0.0
    %337 = vmatprep.subr.mxu0 0.0
    %338 = vmatpush1.msra.mxu0 0.0
    %339 = vmatprep.subr.mxu0 0.0
    %340 = vmatpush1.msra.mxu0 0.0
    %341 = vmatprep.subr.mxu0 0.0
    %342 = vmatpush1.msra.mxu0 0.0
    %343 = vmatprep.subr.mxu0 0.0
    %344 = vmatpush1.msra.mxu0 0.0
    %345 = vmatprep.subr.mxu0 0.0
    %346 = vmatpush1.msra.mxu0 0.0
    %347 = vmatprep.subr.mxu0 0.0
    %348 = vmatpush1.msra.mxu0 0.0
    %349 = vmatprep.subr.mxu0 0.0
    %350 = vmatpush1.msra.mxu0 0.0
    %351 = vmatprep.subr.mxu0 0.0
    %352 = vmatpush1.msra.mxu0 0.0
    %353 = vmatprep.subr.mxu0 0.0
    %354 = vmatpush1.msra.mxu0 0.0
    %355 = vmatprep.subr.mxu0 0.0
    %356 = vmatpush1.msra.mxu0 0.0
    %357 = vmatprep.subr.mxu0 0.0
    %358 = vmatpush1.msra.mxu0 %v298
    %359 = vmatprep.subr.mxu0 0.0
    %360 = vmatpush1.msra.mxu0 %v297
    %361 = vmatprep.subr.mxu0 0.0
    %362 = vmatpush2.msra.mxu0 0.0
    %363 = vmatprep.subr.mxu0 0.0
    %364 = vmatpush2.msra.mxu0 0.0
    %365 = vmatprep.subr.mxu0 0.0
    %366 = vmatpush2.msra.mxu0 0.0
    %367 = vmatprep.subr.mxu0 0.0
    %368 = vmatpush2.msra.mxu0 0.0
    %369 = vmatprep.subr.mxu0 0.0
    %370 = vmatpush2.msra.mxu0 0.0
    %371 = vmatprep.subr.mxu0 0.0
    %372 = vmatpush2.msra.mxu0 0.0
    %373 = vmatprep.subr.mxu0 0.0
    %374 = vmatpush2.msra.mxu0 0.0
    %375 = vmatprep.subr.mxu0 0.0
    %376 = vmatpush2.msra.mxu0 0.0
    %377 = vmatprep.subr.mxu0 0.0
    %378 = vmatpush2.msra.mxu0 0.0
    %379 = vmatprep.subr.mxu0 0.0
    %380 = vmatpush2.msra.mxu0 0.0
    %381 = vmatprep.subr.mxu0 0.0
    %382 = vmatpush2.msra.mxu0 0.0
    %383 = vmatprep.subr.mxu0 0.0
    %384 = vmatpush2.msra.mxu0 0.0
    %385 = vmatprep.subr.mxu0 0.0
    %386 = vmatpush2.msra.mxu0 0.0
    %387 = vmatprep.subr.mxu0 0.0
    %388 = vmatpush2.msra.mxu0 0.0
    %389 = vmatprep.subr.mxu0 0.0
    %390 = vmatpush2.msra.mxu0 0.0
    %391 = vmatprep.subr.mxu0 0.0
    %392 = vmatpush2.msra.mxu0 0.0
    %393 = vmatprep.mubr.f32.mxu0 0.0
    %394 = vmatmul.mubr.f32.gmra.mxu0 %v306
    %v395 = vpop.f32.mrf.mxu0
    %v396 = vadd.f32 %v303, %v395
    %v397 = vpop.f32.mrf.mxu0
    %398 = vmatprep.mubr.f32.mxu0 0.0
    %399 = vmatmul.mubr.f32.gmra.mxu0 %v309
    %v400 = vpop.f32.mrf.mxu0
    %v401 = vadd.f32 %v303, %v400
    %v402 = vpop.f32.mrf.mxu0
    %403 = vmatprep.mubr.f32.mxu0 0.0
    %404 = vmatmul.mubr.f32.gmra.mxu0 %v312
    %v405 = vpop.f32.mrf.mxu0
    %v406 = vadd.f32 %v303, %v405
    %v407 = vpop.f32.mrf.mxu0
    %408 = vmatprep.mubr.f32.mxu0 0.0
    %409 = vmatmul.mubr.f32.gmra.mxu0 %v315
    %v410 = vpop.f32.mrf.mxu0
    %v411 = vadd.f32 %v303, %v410
    %v412 = vpop.f32.mrf.mxu0
    %413 = vmatprep.mubr.f32.mxu0 0.0
    %414 = vmatmul.mubr.f32.gmra.mxu0 %v318
    %v415 = vpop.f32.mrf.mxu0
    %v416 = vadd.f32 %v303, %v415
    %v417 = vpop.f32.mrf.mxu0
    %418 = vmatprep.mubr.f32.mxu0 0.0
    %419 = vmatmul.mubr.f32.gmra.mxu0 %v321
    %v420 = vpop.f32.mrf.mxu0
    %v421 = vadd.f32 %v303, %v420
    %v422 = vpop.f32.mrf.mxu0
    %423 = vmatprep.mubr.f32.mxu0 0.0
    %424 = vmatmul.mubr.f32.gmra.mxu0 %v324
    %v425 = vpop.f32.mrf.mxu0
    %v426 = vadd.f32 %v303, %v425
    %v427 = vpop.f32.mrf.mxu0
    %428 = vmatprep.mubr.f32.mxu0 0.0
    %429 = vmatmul.mubr.f32.gmra.mxu0 %v327
    %v430 = vpop.f32.mrf.mxu0
    %v431 = vadd.f32 %v303, %v430
    %v432 = vpop.f32.mrf.mxu0
    %433 = vdwg.mxu0
    %v434 = vld [vmem:[#allocation2 + $0x10] sm:$0xff]
    %v435 = vld [vmem:[#allocation2 + $0x18] sm:$0xff]
    %v436 = vld [vmem:[#allocation2 + $0x20] sm:$0xff]
    %v437 = vld [vmem:[#allocation2 + $0x28] sm:$0xff]
    %v438 = vpack.c.bf16 %v435, %v434
    %v439 = vpack.c.bf16 %v437, %v436
    %v440 = vpack.c.bf16 %v286, %v286
    %v442 = vsel %vm40, %v440, 0
    %444 = vmatprep.subr.bf16.mxu0 0
    %445 = vmatpush1.bf16.msra.mxu0 0
    %446 = vmatprep.subr.bf16.mxu0 0
    %447 = vmatpush1.bf16.msra.mxu0 0
    %448 = vmatprep.subr.bf16.mxu0 0
    %449 = vmatpush1.bf16.msra.mxu0 0
    %450 = vmatprep.subr.bf16.mxu0 0
    %451 = vmatpush1.bf16.msra.mxu0 0
    %452 = vmatprep.subr.bf16.mxu0 0
    %453 = vmatpush1.bf16.msra.mxu0 0
    %454 = vmatprep.subr.bf16.mxu0 0
    %455 = vmatpush1.bf16.msra.mxu0 0
    %456 = vmatprep.subr.bf16.mxu0 0
    %457 = vmatpush1.bf16.msra.mxu0 %v439
    %458 = vmatprep.subr.bf16.mxu0 0
    %459 = vmatpush1.bf16.msra.mxu0 %v438
    %460 = vmatprep.subr.bf16.mxu0 0
    %461 = vmatpush2.bf16.msra.mxu0 0
    %462 = vmatprep.subr.bf16.mxu0 0
    %463 = vmatpush2.bf16.msra.mxu0 0
    %464 = vmatprep.subr.bf16.mxu0 0
    %465 = vmatpush2.bf16.msra.mxu0 0
    %466 = vmatprep.subr.bf16.mxu0 0
    %467 = vmatpush2.bf16.msra.mxu0 0
    %468 = vmatprep.subr.bf16.mxu0 0
    %469 = vmatpush2.bf16.msra.mxu0 0
    %470 = vmatprep.subr.bf16.mxu0 0
    %471 = vmatpush2.bf16.msra.mxu0 0
    %472 = vmatprep.subr.bf16.mxu0 0
    %473 = vmatpush2.bf16.msra.mxu0 0
    %474 = vmatprep.subr.bf16.mxu0 0
    %475 = vmatpush2.bf16.msra.mxu0 0
    %476 = vmatprep.mubr.bf16.mxu0 0
    %477 = vmatmul.mubr.bf16.gmra.mxu0 %v442
    %v478 = vpop.f32.mrf.mxu0
    %v479 = vadd.f32 0.0, %v478
    %v480 = vpop.f32.mrf.mxu0
    %v481 = vpop.f32.mrf.mxu0
    %v482 = vpop.f32.mrf.mxu0
    %483 = vdwg.mxu0
    %v484 = vadd.f32 %v396, %v479
    %v485 = vtanh.pop %v484
    %v486 = vmul.f32 %v485, 0.5
    %v487 = vadd.f32 %v486, 0.5
    %v488 = vmul.f32 %v487, 0.0
    %490 = vrot.lane.b32.xlu0 %v485, 64
    %v491 = vpop.permute.xlu0 %490
    %v493 = vmul.f32 %v487, %v491
    %495 = vrot.lane.b32.xlu0 %v493, 32
    %v496 = vpop.permute.xlu0 %495
    %v498 = vadd.f32 %v488, %v496
    %v499 = vtanh.pop %v498
    %501 = vrot.lane.b32.xlu0 %v499, 64
    %v502 = vpop.permute.xlu0 %501
    %v504 = vmul.f32 %v487, %v502
    %v505 = vpack.c.bf16 %v504, %v504
    %507 = vrot.lane.b32.xlu0 %v505, 32
    %v508 = vpop.permute.xlu0 %507
    %v510 = vsel %vm40, %v508, 0
    %512 = vmatprep.subr.bf16.mxu0 0
    %513 = vmatpush1.bf16.msra.mxu0 0
    %514 = vmatprep.subr.bf16.mxu0 0
    %515 = vmatpush1.bf16.msra.mxu0 0
    %516 = vmatprep.subr.bf16.mxu0 0
    %517 = vmatpush1.bf16.msra.mxu0 0
    %518 = vmatprep.subr.bf16.mxu0 0
    %519 = vmatpush1.bf16.msra.mxu0 0
    %520 = vmatprep.subr.bf16.mxu0 0
    %521 = vmatpush1.bf16.msra.mxu0 0
    %522 = vmatprep.subr.bf16.mxu0 0
    %523 = vmatpush1.bf16.msra.mxu0 0
    %524 = vmatprep.subr.bf16.mxu0 0
    %525 = vmatpush1.bf16.msra.mxu0 %v439
    %526 = vmatprep.subr.bf16.mxu0 0
    %527 = vmatpush1.bf16.msra.mxu0 %v438
    %528 = vmatprep.subr.bf16.mxu0 0
    %529 = vmatpush2.bf16.msra.mxu0 0
    %530 = vmatprep.subr.bf16.mxu0 0
    %531 = vmatpush2.bf16.msra.mxu0 0
    %532 = vmatprep.subr.bf16.mxu0 0
    %533 = vmatpush2.bf16.msra.mxu0 0
    %534 = vmatprep.subr.bf16.mxu0 0
    %535 = vmatpush2.bf16.msra.mxu0 0
    %536 = vmatprep.subr.bf16.mxu0 0
    %537 = vmatpush2.bf16.msra.mxu0 0
    %538 = vmatprep.subr.bf16.mxu0 0
    %539 = vmatpush2.bf16.msra.mxu0 0
    %540 = vmatprep.subr.bf16.mxu0 0
    %541 = vmatpush2.bf16.msra.mxu0 0
    %542 = vmatprep.subr.bf16.mxu0 0
    %543 = vmatpush2.bf16.msra.mxu0 0
    %544 = vmatprep.mubr.bf16.mxu0 0
    %545 = vmatmul.mubr.bf16.gmra.mxu0 %v510
    %v546 = vpop.f32.mrf.mxu0
    %v547 = vadd.f32 0.0, %v546
    %v548 = vpop.f32.mrf.mxu0
    %v549 = vpop.f32.mrf.mxu0
    %v550 = vpop.f32.mrf.mxu0
    %551 = vdwg.mxu0
    %v552 = vadd.f32 %v401, %v547
    %v553 = vtanh.pop %v552
    %v554 = vmul.f32 %v553, 0.5
    %v555 = vadd.f32 %v554, 0.5
    %v556 = vmul.f32 %v555, %v498
    %558 = vrot.lane.b32.xlu0 %v553, 64
    %v559 = vpop.permute.xlu0 %558
    %v561 = vmul.f32 %v555, %v559
    %563 = vrot.lane.b32.xlu0 %v561, 32
    %v564 = vpop.permute.xlu0 %563
    %v566 = vadd.f32 %v556, %v564
    %v567 = vtanh.pop %v566
    %569 = vrot.lane.b32.xlu0 %v567, 64
    %v570 = vpop.permute.xlu0 %569
    %v572 = vmul.f32 %v555, %v570
    %v573 = vpack.c.bf16 %v572, %v572
    %575 = vrot.lane.b32.xlu0 %v573, 32
    %v576 = vpop.permute.xlu0 %575
    %v578 = vsel %vm40, %v576, 0
    %580 = vmatprep.subr.bf16.mxu0 0
    %581 = vmatpush1.bf16.msra.mxu0 0
    %582 = vmatprep.subr.bf16.mxu0 0
    %583 = vmatpush1.bf16.msra.mxu0 0
    %584 = vmatprep.subr.bf16.mxu0 0
    %585 = vmatpush1.bf16.msra.mxu0 0
    %586 = vmatprep.subr.bf16.mxu0 0
    %587 = vmatpush1.bf16.msra.mxu0 0
    %588 = vmatprep.subr.bf16.mxu0 0
    %589 = vmatpush1.bf16.msra.mxu0 0
    %590 = vmatprep.subr.bf16.mxu0 0
    %591 = vmatpush1.bf16.msra.mxu0 0
    %592 = vmatprep.subr.bf16.mxu0 0
    %593 = vmatpush1.bf16.msra.mxu0 %v439
    %594 = vmatprep.subr.bf16.mxu0 0
    %595 = vmatpush1.bf16.msra.mxu0 %v438
    %596 = vmatprep.subr.bf16.mxu0 0
    %597 = vmatpush2.bf16.msra.mxu0 0
    %598 = vmatprep.subr.bf16.mxu0 0
    %599 = vmatpush2.bf16.msra.mxu0 0
    %600 = vmatprep.subr.bf16.mxu0 0
    %601 = vmatpush2.bf16.msra.mxu0 0
    %602 = vmatprep.subr.bf16.mxu0 0
    %603 = vmatpush2.bf16.msra.mxu0 0
    %604 = vmatprep.subr.bf16.mxu0 0
    %605 = vmatpush2.bf16.msra.mxu0 0
    %606 = vmatprep.subr.bf16.mxu0 0
    %607 = vmatpush2.bf16.msra.mxu0 0
    %608 = vmatprep.subr.bf16.mxu0 0
    %609 = vmatpush2.bf16.msra.mxu0 0
    %610 = vmatprep.subr.bf16.mxu0 0
    %611 = vmatpush2.bf16.msra.mxu0 0
    %612 = vmatprep.mubr.bf16.mxu0 0
    %613 = vmatmul.mubr.bf16.gmra.mxu0 %v578
    %v614 = vpop.f32.mrf.mxu0
    %v615 = vadd.f32 0.0, %v614
    %v616 = vpop.f32.mrf.mxu0
    %v617 = vpop.f32.mrf.mxu0
    %v618 = vpop.f32.mrf.mxu0
    %619 = vdwg.mxu0
    %v620 = vadd.f32 %v406, %v615
    %v621 = vtanh.pop %v620
    %v622 = vmul.f32 %v621, 0.5
    %v623 = vadd.f32 %v622, 0.5
    %v624 = vmul.f32 %v623, %v566
    %626 = vrot.lane.b32.xlu0 %v621, 64
    %v627 = vpop.permute.xlu0 %626
    %v629 = vmul.f32 %v623, %v627
    %631 = vrot.lane.b32.xlu0 %v629, 32
    %v632 = vpop.permute.xlu0 %631
    %v634 = vadd.f32 %v624, %v632
    %v635 = vtanh.pop %v634
    %637 = vrot.lane.b32.xlu0 %v635, 64
    %v638 = vpop.permute.xlu0 %637
    %v640 = vmul.f32 %v623, %v638
    %v641 = vpack.c.bf16 %v640, %v640
    %643 = vrot.lane.b32.xlu0 %v641, 32
    %v644 = vpop.permute.xlu0 %643
    %v646 = vsel %vm40, %v644, 0
    %648 = vmatprep.subr.bf16.mxu0 0
    %649 = vmatpush1.bf16.msra.mxu0 0
    %650 = vmatprep.subr.bf16.mxu0 0
    %651 = vmatpush1.bf16.msra.mxu0 0
    %652 = vmatprep.subr.bf16.mxu0 0
    %653 = vmatpush1.bf16.msra.mxu0 0
    %654 = vmatprep.subr.bf16.mxu0 0
    %655 = vmatpush1.bf16.msra.mxu0 0
    %656 = vmatprep.subr.bf16.mxu0 0
    %657 = vmatpush1.bf16.msra.mxu0 0
    %658 = vmatprep.subr.bf16.mxu0 0
    %659 = vmatpush1.bf16.msra.mxu0 0
    %660 = vmatprep.subr.bf16.mxu0 0
    %661 = vmatpush1.bf16.msra.mxu0 %v439
    %662 = vmatprep.subr.bf16.mxu0 0
    %663 = vmatpush1.bf16.msra.mxu0 %v438
    %664 = vmatprep.subr.bf16.mxu0 0
    %665 = vmatpush2.bf16.msra.mxu0 0
    %666 = vmatprep.subr.bf16.mxu0 0
    %667 = vmatpush2.bf16.msra.mxu0 0
    %668 = vmatprep.subr.bf16.mxu0 0
    %669 = vmatpush2.bf16.msra.mxu0 0
    %670 = vmatprep.subr.bf16.mxu0 0
    %671 = vmatpush2.bf16.msra.mxu0 0
    %672 = vmatprep.subr.bf16.mxu0 0
    %673 = vmatpush2.bf16.msra.mxu0 0
    %674 = vmatprep.subr.bf16.mxu0 0
    %675 = vmatpush2.bf16.msra.mxu0 0
    %676 = vmatprep.subr.bf16.mxu0 0
    %677 = vmatpush2.bf16.msra.mxu0 0
    %678 = vmatprep.subr.bf16.mxu0 0
    %679 = vmatpush2.bf16.msra.mxu0 0
    %680 = vmatprep.mubr.bf16.mxu0 0
    %681 = vmatmul.mubr.bf16.gmra.mxu0 %v646
    %v682 = vpop.f32.mrf.mxu0
    %v683 = vadd.f32 0.0, %v682
    %v684 = vpop.f32.mrf.mxu0
    %v685 = vpop.f32.mrf.mxu0
    %v686 = vpop.f32.mrf.mxu0
    %687 = vdwg.mxu0
    %v688 = vadd.f32 %v411, %v683
    %v689 = vtanh.pop %v688
    %v690 = vmul.f32 %v689, 0.5
    %v691 = vadd.f32 %v690, 0.5
    %v692 = vmul.f32 %v691, %v634
    %694 = vrot.lane.b32.xlu0 %v689, 64
    %v695 = vpop.permute.xlu0 %694
    %v697 = vmul.f32 %v691, %v695
    %699 = vrot.lane.b32.xlu0 %v697, 32
    %v700 = vpop.permute.xlu0 %699
    %v702 = vadd.f32 %v692, %v700
    %v703 = vtanh.pop %v702
    %705 = vrot.lane.b32.xlu0 %v703, 64
    %v706 = vpop.permute.xlu0 %705
    %v708 = vmul.f32 %v691, %v706
    %v709 = vpack.c.bf16 %v708, %v708
    %711 = vrot.lane.b32.xlu0 %v709, 32
    %v712 = vpop.permute.xlu0 %711
    %v714 = vsel %vm40, %v712, 0
    %716 = vmatprep.subr.bf16.mxu0 0
    %717 = vmatpush1.bf16.msra.mxu0 0
    %718 = vmatprep.subr.bf16.mxu0 0
    %719 = vmatpush1.bf16.msra.mxu0 0
    %720 = vmatprep.subr.bf16.mxu0 0
    %721 = vmatpush1.bf16.msra.mxu0 0
    %722 = vmatprep.subr.bf16.mxu0 0
    %723 = vmatpush1.bf16.msra.mxu0 0
    %724 = vmatprep.subr.bf16.mxu0 0
    %725 = vmatpush1.bf16.msra.mxu0 0
    %726 = vmatprep.subr.bf16.mxu0 0
    %727 = vmatpush1.bf16.msra.mxu0 0
    %728 = vmatprep.subr.bf16.mxu0 0
    %729 = vmatpush1.bf16.msra.mxu0 %v439
    %730 = vmatprep.subr.bf16.mxu0 0
    %731 = vmatpush1.bf16.msra.mxu0 %v438
    %732 = vmatprep.subr.bf16.mxu0 0
    %733 = vmatpush2.bf16.msra.mxu0 0
    %734 = vmatprep.subr.bf16.mxu0 0
    %735 = vmatpush2.bf16.msra.mxu0 0
    %736 = vmatprep.subr.bf16.mxu0 0
    %737 = vmatpush2.bf16.msra.mxu0 0
    %738 = vmatprep.subr.bf16.mxu0 0
    %739 = vmatpush2.bf16.msra.mxu0 0
    %740 = vmatprep.subr.bf16.mxu0 0
    %741 = vmatpush2.bf16.msra.mxu0 0
    %742 = vmatprep.subr.bf16.mxu0 0
    %743 = vmatpush2.bf16.msra.mxu0 0
    %744 = vmatprep.subr.bf16.mxu0 0
    %745 = vmatpush2.bf16.msra.mxu0 0
    %746 = vmatprep.subr.bf16.mxu0 0
    %747 = vmatpush2.bf16.msra.mxu0 0
    %748 = vmatprep.mubr.bf16.mxu0 0
    %749 = vmatmul.mubr.bf16.gmra.mxu0 %v714
    %v750 = vpop.f32.mrf.mxu0
    %v751 = vadd.f32 0.0, %v750
    %v752 = vpop.f32.mrf.mxu0
    %v753 = vpop.f32.mrf.mxu0
    %v754 = vpop.f32.mrf.mxu0
    %755 = vdwg.mxu0
    %v756 = vadd.f32 %v416, %v751
    %v757 = vtanh.pop %v756
    %v758 = vmul.f32 %v757, 0.5
    %v759 = vadd.f32 %v758, 0.5
    %v760 = vmul.f32 %v759, %v702
    %762 = vrot.lane.b32.xlu0 %v757, 64
    %v763 = vpop.permute.xlu0 %762
    %v765 = vmul.f32 %v759, %v763
    %767 = vrot.lane.b32.xlu0 %v765, 32
    %v768 = vpop.permute.xlu0 %767
    %v770 = vadd.f32 %v760, %v768
    %v771 = vtanh.pop %v770
    %773 = vrot.lane.b32.xlu0 %v771, 64
    %v774 = vpop.permute.xlu0 %773
    %v776 = vmul.f32 %v759, %v774
    %v777 = vpack.c.bf16 %v776, %v776
    %779 = vrot.lane.b32.xlu0 %v777, 32
    %v780 = vpop.permute.xlu0 %779
    %v782 = vsel %vm40, %v780, 0
    %784 = vmatprep.subr.bf16.mxu0 0
    %785 = vmatpush1.bf16.msra.mxu0 0
    %786 = vmatprep.subr.bf16.mxu0 0
    %787 = vmatpush1.bf16.msra.mxu0 0
    %788 = vmatprep.subr.bf16.mxu0 0
    %789 = vmatpush1.bf16.msra.mxu0 0
    %790 = vmatprep.subr.bf16.mxu0 0
    %791 = vmatpush1.bf16.msra.mxu0 0
    %792 = vmatprep.subr.bf16.mxu0 0
    %793 = vmatpush1.bf16.msra.mxu0 0
    %794 = vmatprep.subr.bf16.mxu0 0
    %795 = vmatpush1.bf16.msra.mxu0 0
    %796 = vmatprep.subr.bf16.mxu0 0
    %797 = vmatpush1.bf16.msra.mxu0 %v439
    %798 = vmatprep.subr.bf16.mxu0 0
    %799 = vmatpush1.bf16.msra.mxu0 %v438
    %800 = vmatprep.subr.bf16.mxu0 0
    %801 = vmatpush2.bf16.msra.mxu0 0
    %802 = vmatprep.subr.bf16.mxu0 0
    %803 = vmatpush2.bf16.msra.mxu0 0
    %804 = vmatprep.subr.bf16.mxu0 0
    %805 = vmatpush2.bf16.msra.mxu0 0
    %806 = vmatprep.subr.bf16.mxu0 0
    %807 = vmatpush2.bf16.msra.mxu0 0
    %808 = vmatprep.subr.bf16.mxu0 0
    %809 = vmatpush2.bf16.msra.mxu0 0
    %810 = vmatprep.subr.bf16.mxu0 0
    %811 = vmatpush2.bf16.msra.mxu0 0
    %812 = vmatprep.subr.bf16.mxu0 0
    %813 = vmatpush2.bf16.msra.mxu0 0
    %814 = vmatprep.subr.bf16.mxu0 0
    %815 = vmatpush2.bf16.msra.mxu0 0
    %816 = vmatprep.mubr.bf16.mxu0 0
    %817 = vmatmul.mubr.bf16.gmra.mxu0 %v782
    %v818 = vpop.f32.mrf.mxu0
    %v819 = vadd.f32 0.0, %v818
    %v820 = vpop.f32.mrf.mxu0
    %v821 = vpop.f32.mrf.mxu0
    %v822 = vpop.f32.mrf.mxu0
    %823 = vdwg.mxu0
    %v824 = vadd.f32 %v421, %v819
    %v825 = vtanh.pop %v824
    %v826 = vmul.f32 %v825, 0.5
    %v827 = vadd.f32 %v826, 0.5
    %v828 = vmul.f32 %v827, %v770
    %830 = vrot.lane.b32.xlu0 %v825, 64
    %v831 = vpop.permute.xlu0 %830
    %v833 = vmul.f32 %v827, %v831
    %835 = vrot.lane.b32.xlu0 %v833, 32
    %v836 = vpop.permute.xlu0 %835
    %v838 = vadd.f32 %v828, %v836
    %v839 = vtanh.pop %v838
    %841 = vrot.lane.b32.xlu0 %v839, 64
    %v842 = vpop.permute.xlu0 %841
    %v844 = vmul.f32 %v827, %v842
    %v845 = vpack.c.bf16 %v844, %v844
    %847 = vrot.lane.b32.xlu0 %v845, 32
    %v848 = vpop.permute.xlu0 %847
    %v850 = vsel %vm40, %v848, 0
    %852 = vmatprep.subr.bf16.mxu0 0
    %853 = vmatpush1.bf16.msra.mxu0 0
    %854 = vmatprep.subr.bf16.mxu0 0
    %855 = vmatpush1.bf16.msra.mxu0 0
    %856 = vmatprep.subr.bf16.mxu0 0
    %857 = vmatpush1.bf16.msra.mxu0 0
    %858 = vmatprep.subr.bf16.mxu0 0
    %859 = vmatpush1.bf16.msra.mxu0 0
    %860 = vmatprep.subr.bf16.mxu0 0
    %861 = vmatpush1.bf16.msra.mxu0 0
    %862 = vmatprep.subr.bf16.mxu0 0
    %863 = vmatpush1.bf16.msra.mxu0 0
    %864 = vmatprep.subr.bf16.mxu0 0
    %865 = vmatpush1.bf16.msra.mxu0 %v439
    %866 = vmatprep.subr.bf16.mxu0 0
    %867 = vmatpush1.bf16.msra.mxu0 %v438
    %868 = vmatprep.subr.bf16.mxu0 0
    %869 = vmatpush2.bf16.msra.mxu0 0
    %870 = vmatprep.subr.bf16.mxu0 0
    %871 = vmatpush2.bf16.msra.mxu0 0
    %872 = vmatprep.subr.bf16.mxu0 0
    %873 = vmatpush2.bf16.msra.mxu0 0
    %874 = vmatprep.subr.bf16.mxu0 0
    %875 = vmatpush2.bf16.msra.mxu0 0
    %876 = vmatprep.subr.bf16.mxu0 0
    %877 = vmatpush2.bf16.msra.mxu0 0
    %878 = vmatprep.subr.bf16.mxu0 0
    %879 = vmatpush2.bf16.msra.mxu0 0
    %880 = vmatprep.subr.bf16.mxu0 0
    %881 = vmatpush2.bf16.msra.mxu0 0
    %882 = vmatprep.subr.bf16.mxu0 0
    %883 = vmatpush2.bf16.msra.mxu0 0
    %884 = vmatprep.mubr.bf16.mxu0 0
    %885 = vmatmul.mubr.bf16.gmra.mxu0 %v850
    %v886 = vpop.f32.mrf.mxu0
    %v887 = vadd.f32 0.0, %v886
    %v888 = vpop.f32.mrf.mxu0
    %v889 = vpop.f32.mrf.mxu0
    %v890 = vpop.f32.mrf.mxu0
    %891 = vdwg.mxu0
    %v892 = vadd.f32 %v426, %v887
    %v893 = vtanh.pop %v892
    %v894 = vmul.f32 %v893, 0.5
    %v895 = vadd.f32 %v894, 0.5
    %v896 = vmul.f32 %v895, %v838
    %898 = vrot.lane.b32.xlu0 %v893, 64
    %v899 = vpop.permute.xlu0 %898
    %v901 = vmul.f32 %v895, %v899
    %903 = vrot.lane.b32.xlu0 %v901, 32
    %v904 = vpop.permute.xlu0 %903
    %v906 = vadd.f32 %v896, %v904
    %v907 = vtanh.pop %v906
    %909 = vrot.lane.b32.xlu0 %v907, 64
    %v910 = vpop.permute.xlu0 %909
    %v912 = vmul.f32 %v895, %v910
    %v913 = vpack.c.bf16 %v912, %v912
    %915 = vrot.lane.b32.xlu0 %v913, 32
    %v916 = vpop.permute.xlu0 %915
    %v918 = vsel %vm40, %v916, 0
    %920 = vmatprep.subr.bf16.mxu0 0
    %921 = vmatpush1.bf16.msra.mxu0 0
    %922 = vmatprep.subr.bf16.mxu0 0
    %923 = vmatpush1.bf16.msra.mxu0 0
    %924 = vmatprep.subr.bf16.mxu0 0
    %925 = vmatpush1.bf16.msra.mxu0 0
    %926 = vmatprep.subr.bf16.mxu0 0
    %927 = vmatpush1.bf16.msra.mxu0 0
    %928 = vmatprep.subr.bf16.mxu0 0
    %929 = vmatpush1.bf16.msra.mxu0 0
    %930 = vmatprep.subr.bf16.mxu0 0
    %931 = vmatpush1.bf16.msra.mxu0 0
    %932 = vmatprep.subr.bf16.mxu0 0
    %933 = vmatpush1.bf16.msra.mxu0 %v439
    %934 = vmatprep.subr.bf16.mxu0 0
    %935 = vmatpush1.bf16.msra.mxu0 %v438
    %936 = vmatprep.subr.bf16.mxu0 0
    %937 = vmatpush2.bf16.msra.mxu0 0
    %938 = vmatprep.subr.bf16.mxu0 0
    %939 = vmatpush2.bf16.msra.mxu0 0
    %940 = vmatprep.subr.bf16.mxu0 0
    %941 = vmatpush2.bf16.msra.mxu0 0
    %942 = vmatprep.subr.bf16.mxu0 0
    %943 = vmatpush2.bf16.msra.mxu0 0
    %944 = vmatprep.subr.bf16.mxu0 0
    %945 = vmatpush2.bf16.msra.mxu0 0
    %946 = vmatprep.subr.bf16.mxu0 0
    %947 = vmatpush2.bf16.msra.mxu0 0
    %948 = vmatprep.subr.bf16.mxu0 0
    %949 = vmatpush2.bf16.msra.mxu0 0
    %950 = vmatprep.subr.bf16.mxu0 0
    %951 = vmatpush2.bf16.msra.mxu0 0
    %952 = vmatprep.mubr.bf16.mxu0 0
    %953 = vmatmul.mubr.bf16.gmra.mxu0 %v918
    %v954 = vpop.f32.mrf.mxu0
    %v955 = vadd.f32 0.0, %v954
    %v956 = vpop.f32.mrf.mxu0
    %v957 = vpop.f32.mrf.mxu0
    %v958 = vpop.f32.mrf.mxu0
    %959 = vdwg.mxu0
    %v960 = vadd.f32 %v431, %v955
    %v961 = vtanh.pop %v960
    %v962 = vmul.f32 %v961, 0.5
    %v963 = vadd.f32 %v962, 0.5
    %v964 = vmul.f32 %v963, %v906
    %966 = vrot.lane.b32.xlu0 %v961, 64
    %v967 = vpop.permute.xlu0 %966
    %v969 = vmul.f32 %v963, %v967
    %971 = vrot.lane.b32.xlu0 %v969, 32
    %v972 = vpop.permute.xlu0 %971
    %v974 = vadd.f32 %v964, %v972
    %v975 = vtanh.pop %v974
    %977 = vrot.lane.b32.xlu0 %v975, 64
    %v978 = vpop.permute.xlu0 %977
    %v980 = vmul.f32 %v963, %v978
    %v981 = vld [vmem:[#allocation2 + $0xf0] sm:$0xff]
    %v982 = vld [vmem:[#allocation2 + $0xf8] sm:$0xff]
    %v983 = vld [vmem:[#allocation2 + $0x100] sm:$0xff]
    %v984 = vld [vmem:[#allocation2 + $0x108] sm:$0xff]
    %v985 = vld [vmem:[#allocation2 + $0x110] sm:$0x1]
    %v986 = vlaneseq
    %v987 = vshrl.u32 %v986, 7
    %v988 = vsub.s32 0, %v987
    %v989 = vrot.slane %v985, %v988
    %991 = vrot.lane.b32.xlu0 %v980, 32
    %v992 = vpop.permute.xlu0 %991
    %v993 = vsel %vm40, %v992, 0
    %995 = vmatprep.subr.mxu0 0.0
    %996 = vmatpush1.msra.mxu0 0.0
    %997 = vmatprep.subr.mxu0 0.0
    %998 = vmatpush1.msra.mxu0 0.0
    %999 = vmatprep.subr.mxu0 0.0
    %1000 = vmatpush1.msra.mxu0 0.0
    %1001 = vmatprep.subr.mxu0 0.0
    %1002 = vmatpush1.msra.mxu0 0.0
    %1003 = vmatprep.subr.mxu0 0.0
    %1004 = vmatpush1.msra.mxu0 0.0
    %1005 = vmatprep.subr.mxu0 0.0
    %1006 = vmatpush1.msra.mxu0 0.0
    %1007 = vmatprep.subr.mxu0 0.0
    %1008 = vmatpush1.msra.mxu0 0.0
    %1009 = vmatprep.subr.mxu0 0.0
    %1010 = vmatpush1.msra.mxu0 0.0
    %1011 = vmatprep.subr.mxu0 0.0
    %1012 = vmatpush1.msra.mxu0 0.0
    %1013 = vmatprep.subr.mxu0 0.0
    %1014 = vmatpush1.msra.mxu0 0.0
    %1015 = vmatprep.subr.mxu0 0.0
    %1016 = vmatpush1.msra.mxu0 0.0
    %1017 = vmatprep.subr.mxu0 0.0
    %1018 = vmatpush1.msra.mxu0 0.0
    %1019 = vmatprep.subr.mxu0 0.0
    %1020 = vmatpush1.msra.mxu0 %v984
    %1021 = vmatprep.subr.mxu0 0.0
    %1022 = vmatpush1.msra.mxu0 %v983
    %1023 = vmatprep.subr.mxu0 0.0
    %1024 = vmatpush1.msra.mxu0 %v982
    %1025 = vmatprep.subr.mxu0 0.0
    %1026 = vmatpush1.msra.mxu0 %v981
    %1027 = vmatprep.subr.mxu0 0.0
    %1028 = vmatpush2.msra.mxu0 0.0
    %1029 = vmatprep.subr.mxu0 0.0
    %1030 = vmatpush2.msra.mxu0 0.0
    %1031 = vmatprep.subr.mxu0 0.0
    %1032 = vmatpush2.msra.mxu0 0.0
    %1033 = vmatprep.subr.mxu0 0.0
    %1034 = vmatpush2.msra.mxu0 0.0
    %1035 = vmatprep.subr.mxu0 0.0
    %1036 = vmatpush2.msra.mxu0 0.0
    %1037 = vmatprep.subr.mxu0 0.0
    %1038 = vmatpush2.msra.mxu0 0.0
    %1039 = vmatprep.subr.mxu0 0.0
    %1040 = vmatpush2.msra.mxu0 0.0
    %1041 = vmatprep.subr.mxu0 0.0
    %1042 = vmatpush2.msra.mxu0 0.0
    %1043 = vmatprep.subr.mxu0 0.0
    %1044 = vmatpush2.msra.mxu0 0.0
    %1045 = vmatprep.subr.mxu0 0.0
    %1046 = vmatpush2.msra.mxu0 0.0
    %1047 = vmatprep.subr.mxu0 0.0
    %1048 = vmatpush2.msra.mxu0 0.0
    %1049 = vmatprep.subr.mxu0 0.0
    %1050 = vmatpush2.msra.mxu0 0.0
    %1051 = vmatprep.subr.mxu0 0.0
    %1052 = vmatpush2.msra.mxu0 0.0
    %1053 = vmatprep.subr.mxu0 0.0
    %1054 = vmatpush2.msra.mxu0 0.0
    %1055 = vmatprep.subr.mxu0 0.0
    %1056 = vmatpush2.msra.mxu0 0.0
    %1057 = vmatprep.subr.mxu0 0.0
    %1058 = vmatpush2.msra.mxu0 0.0
    %1059 = vmatprep.mubr.f32.mxu0 0.0
    %1060 = vmatmul.mubr.f32.gmra.mxu0 %v993
    %v1061 = vpop.f32.mrf.mxu0
    %v1062 = vadd.f32 %v989, %v1061
    %v1063 = vpop.f32.mrf.mxu0
    %1064 = vdwg.mxu0
    %vm1065 = vcmask 64512
    %1066 = vst.msk [vmem:[#allocation5] sm:$0xff] %vm1065, %v1062
    // Predicated region
    $region18: #{tpu_custom_call.1} parent=1 // pred_check
      _
    $region19: #{tpu_custom_call.1} parent=1 // pred_check_branch
      %1068 = sbr.rel (0) target = $region21
    $region20: #{tpu_custom_call.1} parent=1 // pred_region
      %s1070 = ssub.s32 128, 128
      %1071 = vsyncadd [#allocation4], %s1070
      %s1073 = sshll.u32 [#allocation5], 4
      %s1074 = int_to_ptr.vmem [resolvable:$true] %s1073
      %1076 = dma.vmem_to_hbm [thread:$0]  %s1074, 128, %s3, [#allocation4]
    $region21: #{tpu_custom_call.1} parent=1 // pred_fallthru
      _
    // Predicated region
    $region22: #{tpu_custom_call.1} parent=1 // pred_check
      _
    $region23: #{tpu_custom_call.1} parent=1 // pred_check_branch
      %1078 = sbr.rel (0) target = $region25
    $region24: #{tpu_custom_call.1} parent=1 // pred_region
      %1079 = dma.done [#allocation4], 128
    $region25: #{tpu_custom_call.1} parent=1 // pred_fallthru
      _
    %1080 = vsyncpa [#allocation3], 1
    %1081 = vsyncpa [#allocation4], 1

</llo_original>
